<compile_context>
chip_gen: v6e
topology: v6e:2x2x1
jax: 0.10.0
libtpu: 0.0.40
codegen_flags: <defaults>
</compile_context>

<pallas_src>
import functools

import jax
import jax.numpy as jnp
from jax.experimental import pallas as pl
from jax.experimental.pallas import tpu as pltpu

H1, H2 = 30, 40            # hidden sizes
P_ROWS, P_COLS = 40, 35    # packed parameter slab shape
TB_CAP = 4096              # max lane-tile (batch) size; VMEM use ~1.5 MB/tile

# Packed slab layout (f32, (40, 35)):
#   rows 0:40, cols  0:30 -> W2  (fc2.weight, (40, 30))
#   rows 0:30, col     30 -> w1  (fc1.weight flattened, (30,))
#   rows 0:30, col     31 -> b1  (fc1.bias, (30,))
#   rows 0:40, col     32 -> b2  (fc2.bias, (40,))
#   rows 0:40, col     33 -> w3  (fc3.weight flattened, (40,))
#   row  0,    col     34 -> b3  (fc3.bias scalar)


def _sigmoid(x):
    # Mathematically exact sigmoid via a single EUP tanh per element.
    return 0.5 * jnp.tanh(0.5 * x) + 0.5


def mlp_kernel(p_ref, xt_ref, o_ref):
    x = xt_ref[...]                       # (1, TB)   batch on lanes

    w2 = p_ref[:, 0:H1]                   # (40, 30)
    w1c = p_ref[0:H1, 30:31]              # (30, 1)
    b1c = p_ref[0:H1, 31:32]              # (30, 1)
    b2c = p_ref[:, 32:33]                 # (40, 1)
    w3c = p_ref[:, 33:34]                 # (40, 1)
    b3 = p_ref[0:1, 34:35]                # (1, 1)

    # fc1 (in_features = 1): outer product on the VPU, skip the MXU entirely.
    h1 = _sigmoid(w1c * x + b1c)                                     # (30, TB)

    # fc2: the only real matmul -> MXU, f32 accumulate.
    h2 = jnp.dot(w2, h1,
                 preferred_element_type=jnp.float32,
                 precision=jax.lax.Precision.HIGHEST) + b2c          # (40, TB)
    h2 = _sigmoid(h2)

    # fc3 (out_features = 1): multiply + sublane reduce -> lane-dense (1, TB).
    h3 = jnp.sum(w3c * h2, axis=0, keepdims=True) + b3               # (1, TB)

    o_ref[...] = h3.astype(o_ref.dtype)


def pack_params(params):
    """Pack all weights/biases (PyTorch shapes) into one (40, 35) f32 slab.

    Call ONCE at init time; pass the resulting slab to mlp_forward.
    """
    w1 = params["w1"].astype(jnp.float32).reshape(H1)    # (30, 1) -> (30,)
    b1 = params["b1"].astype(jnp.float32)                # (30,)
    w2 = params["w2"].astype(jnp.float32)                # (40, 30)
    b2 = params["b2"].astype(jnp.float32)                # (40,)
    w3 = params["w3"].astype(jnp.float32).reshape(H2)    # (1, 40) -> (40,)
    b3 = params["b3"].astype(jnp.float32)                # (1,)

    slab = jnp.zeros((P_ROWS, P_COLS), jnp.float32)
    slab = slab.at[:, 0:H1].set(w2)
    slab = slab.at[0:H1, 30].set(w1)
    slab = slab.at[0:H1, 31].set(b1)
    slab = slab.at[:, 32].set(b2)
    slab = slab.at[:, 33].set(w3)
    slab = slab.at[0, 34].set(b3[0])
    return slab


def _pick_tile(B):
    """Lane-tile size: multiple of 128, capped, and >=2 tiles for large B
    so the 'parallel' batch axis can split across v7x's two TensorCores."""
    tb = pl.cdiv(B, 2)                    # aim for at least 2 tiles
    tb = pl.cdiv(tb, 128) * 128           # lane-dense
    tb = max(128, min(tb, TB_CAP))
    return tb


@functools.partial(jax.jit, donate_argnums=())
def mlp_forward(x, slab):
    """x: (B, 1) float32, slab: prebuilt (40, 35) f32 param slab -> (B, 1)."""
    B = x.shape[0]
    TB = _pick_tile(B)
    Bp = pl.cdiv(B, TB) * TB

    # Batch on the lane axis; fused pad under jit (no explicit zeros+set copy).
    xt = x.reshape(1, B).astype(jnp.float32)
    if Bp != B:
        xt = jnp.pad(xt, ((0, 0), (0, Bp - B)))

    grid_spec = pltpu.PrefetchScalarGridSpec(
        num_scalar_prefetch=0,
        grid=(Bp // TB,),
        in_specs=[
            # Params: constant index_map -> one DMA, VMEM-resident across tiles.
            pl.BlockSpec((P_ROWS, P_COLS), lambda i: (0, 0)),
            # Activations: one lane-dense batch tile per grid step.
            pl.BlockSpec((1, TB), lambda i: (0, i)),
        ],
        out_specs=pl.BlockSpec((1, TB), lambda i: (0, i)),
    )

    out = pl.pallas_call(
        mlp_kernel,
        out_shape=jax.ShapeDtypeStruct((1, Bp), jnp.float32),
        grid_spec=grid_spec,
        compiler_params=pltpu.CompilerParams(
            dimension_semantics=("parallel",)),  # batch tiles shard across TCs
    )(slab, xt)

    return out[0, :B].reshape(B, 1).astype(x.dtype)


def init_params(key):
    """Deterministic init mimicking PyTorch nn.Linear (uniform +/- 1/sqrt(fan_in))."""
    keys = jax.random.split(key, 6)

    def lin(kw, kb, out_f, in_f):
        bound = 1.0 / jnp.sqrt(jnp.float32(in_f))
        w = jax.random.uniform(kw, (out_f, in_f), jnp.float32, -bound, bound)
        b = jax.random.uniform(kb, (out_f,), jnp.float32, -bound, bound)
        return w, b

    w1, b1 = lin(keys[0], keys[1], 30, 1)
    w2, b2 = lin(keys[2], keys[3], 40, 30)
    w3, b3 = lin(keys[4], keys[5], 1, 40)
    return {"w1": w1, "b1": b1, "w2": w2, "b2": b2, "w3": w3, "b3": b3}


def reference_forward(x, p):
    hi = jax.lax.Precision.HIGHEST
    h = jax.nn.sigmoid(jnp.dot(x, p["w1"].T, precision=hi) + p["b1"])
    h = jax.nn.sigmoid(jnp.dot(h, p["w2"].T, precision=hi) + p["b2"])
    return jnp.dot(h, p["w3"].T, precision=hi) + p["b3"]


if __name__ == "__main__":
    key = jax.random.PRNGKey(0)
    k_param, k_x = jax.random.split(key)

    params = init_params(k_param)
    slab = jax.block_until_ready(pack_params(params))   # packed once, not per call

    x = jax.random.normal(k_x, (8, 1), jnp.float32)      # batch=8, in_features=1

    out = mlp_forward(x, slab)
    out = jax.block_until_ready(out)

    ref = reference_forward(x, params)
    assert out.shape == (8, 1), out.shape
    assert jnp.allclose(out, ref, atol=1e-5, rtol=1e-5), (out, ref)

    print("KERNEL_OK")
</pallas_src>

<mosaic_0001>
module attributes {stable_mosaic.version = 11 : i64} {
  func.func @mlp_kernel(%arg0: i32, %arg1: memref<40x35xf32, #tpu.memory_space<vmem>>, %arg2: memref<1x128xf32, #tpu.memory_space<vmem>>, %arg3: memref<1x128xf32, #tpu.memory_space<vmem>>) attributes {dimension_semantics = [#tpu.dimension_semantics<parallel>], iteration_bounds = array<i64: 1>, scalar_prefetch = 0 : i64, scratch_operands = 0 : i64, tpu.core_type = #tpu.core_type<tc>, window_params = [{pipeline_mode = #tpu.pipeline_mode<synchronous>, transform_indices = @transform_0, window_bounds = array<i64: 40, 35>}, {transform_indices = @transform_1, window_bounds = array<i64: 1, 128>}, {transform_indices = @transform_2, window_bounds = array<i64: 1, 128>}]} {
    %c0 = arith.constant 0 : index
    %c0_0 = arith.constant 0 : index
    %0 = vector.load %arg2[%c0, %c0_0] : memref<1x128xf32, #tpu.memory_space<vmem>>, vector<1x128xf32>
    %c0_1 = arith.constant 0 : index
    %c0_2 = arith.constant 0 : index
    %1 = vector.load %arg1[%c0_1, %c0_2] : memref<40x35xf32, #tpu.memory_space<vmem>>, vector<40x30xf32>
    %c0_3 = arith.constant 0 : index
    %c30 = arith.constant 30 : index
    %2 = vector.load %arg1[%c0_3, %c30] : memref<40x35xf32, #tpu.memory_space<vmem>>, vector<30x1xf32>
    %c0_4 = arith.constant 0 : index
    %c31 = arith.constant 31 : index
    %3 = vector.load %arg1[%c0_4, %c31] : memref<40x35xf32, #tpu.memory_space<vmem>>, vector<30x1xf32>
    %c0_5 = arith.constant 0 : index
    %c32 = arith.constant 32 : index
    %4 = vector.load %arg1[%c0_5, %c32] : memref<40x35xf32, #tpu.memory_space<vmem>>, vector<40x1xf32>
    %c0_6 = arith.constant 0 : index
    %c33 = arith.constant 33 : index
    %5 = vector.load %arg1[%c0_6, %c33] : memref<40x35xf32, #tpu.memory_space<vmem>>, vector<40x1xf32>
    %c0_7 = arith.constant 0 : index
    %c34 = arith.constant 34 : index
    %6 = vector.load %arg1[%c0_7, %c34] : memref<40x35xf32, #tpu.memory_space<vmem>>, vector<1x1xf32>
    %7 = vector.broadcast %2 : vector<30x1xf32> to vector<30x128xf32>
    %8 = vector.broadcast %0 : vector<1x128xf32> to vector<30x128xf32>
    %9 = arith.mulf %7, %8 : vector<30x128xf32>
    %10 = vector.broadcast %3 : vector<30x1xf32> to vector<30x128xf32>
    %11 = arith.addf %9, %10 : vector<30x128xf32>
    %cst = arith.constant 5.000000e-01 : f32
    %12 = vector.broadcast %cst : f32 to vector<30x128xf32>
    %13 = arith.mulf %12, %11 : vector<30x128xf32>
    %14 = math.tanh %13 : vector<30x128xf32>
    %cst_8 = arith.constant 5.000000e-01 : f32
    %15 = vector.broadcast %cst_8 : f32 to vector<30x128xf32>
    %16 = arith.mulf %15, %14 : vector<30x128xf32>
    %cst_9 = arith.constant 5.000000e-01 : f32
    %17 = vector.broadcast %cst_9 : f32 to vector<30x128xf32>
    %18 = arith.addf %16, %17 : vector<30x128xf32>
    %cst_10 = arith.constant dense<0.000000e+00> : vector<40x128xf32>
    %19 = tpu.matmul %1, %18, %cst_10 {dimension_numbers = #tpu.dot_dimension_numbers<[1], [0], [0], [1], [0, 0, 1, 1], [], []>, precision = #tpu.contract_precision<fp32>} : vector<40x30xf32>, vector<30x128xf32>, vector<40x128xf32> -> vector<40x128xf32>
    %20 = vector.broadcast %4 : vector<40x1xf32> to vector<40x128xf32>
    %21 = arith.addf %19, %20 : vector<40x128xf32>
    %cst_11 = arith.constant 5.000000e-01 : f32
    %22 = vector.broadcast %cst_11 : f32 to vector<40x128xf32>
    %23 = arith.mulf %22, %21 : vector<40x128xf32>
    %24 = math.tanh %23 : vector<40x128xf32>
    %cst_12 = arith.constant 5.000000e-01 : f32
    %25 = vector.broadcast %cst_12 : f32 to vector<40x128xf32>
    %26 = arith.mulf %25, %24 : vector<40x128xf32>
    %cst_13 = arith.constant 5.000000e-01 : f32
    %27 = vector.broadcast %cst_13 : f32 to vector<40x128xf32>
    %28 = arith.addf %26, %27 : vector<40x128xf32>
    %29 = vector.broadcast %5 : vector<40x1xf32> to vector<40x128xf32>
    %30 = arith.mulf %29, %28 : vector<40x128xf32>
    %cst_14 = arith.constant dense<0.000000e+00> : vector<128xf32>
    %31 = vector.multi_reduction <add>, %30, %cst_14 [0] : vector<40x128xf32> to vector<128xf32>
    %32 = vector.shape_cast %31 : vector<128xf32> to vector<1x128xf32>
    %33 = vector.broadcast %6 : vector<1x1xf32> to vector<1x128xf32>
    %34 = arith.addf %32, %33 : vector<1x128xf32>
    %c0_15 = arith.constant 0 : index
    %c0_16 = arith.constant 0 : index
    %35 = vector.load %arg3[%c0_15, %c0_16] : memref<1x128xf32, #tpu.memory_space<vmem>>, vector<1x128xf32>
    tpu.vector_store %arg3[%c0_15, %c0_16], %34 {strides = array<i32>} : memref<1x128xf32, #tpu.memory_space<vmem>>, vector<1x128xf32>,
    return
  }
  func.func @transform_0(%arg0: i32) -> (i32, i32) {
    %c0_i32 = arith.constant 0 : i32
    %c0_i32_0 = arith.constant 0 : i32
    %c0_i32_1 = arith.constant 0 : i32
    return %c0_i32, %c0_i32_0 : i32, i32
  }
  func.func @transform_1(%arg0: i32) -> (i32, i32) {
    %c0_i32 = arith.constant 0 : i32
    %c0_i32_0 = arith.constant 0 : i32
    return %c0_i32, %arg0 : i32, i32
  }
  func.func @transform_2(%arg0: i32) -> (i32, i32) {
    %c0_i32 = arith.constant 0 : i32
    %c0_i32_0 = arith.constant 0 : i32
    return %c0_i32, %arg0 : i32, i32
  }
}

</mosaic_0001>

<llo_original>
// kernel: mlp_forward.1
$region0: #{mlp_forward.1}
  #allocation0 [shape = 'u32[]', space=smem, size = 0x4, offset = 0x4, fixed_abs, tag = 'smem constant byte address 0x4 - core index']
  #allocation1 [shape = 'u32[144,128]{1,0:T(1,128)}', space=vmem, size = 0x12000, scoped, tag = 'internal scratch']
  %s0 = inlined_call_operand.hbm [shape: f32[40,35], index: 0, kind: input, shape index: {}]
  %s1 = inlined_call_operand.vmem [shape: f32[1,128], index: 1, kind: input, shape index: {}]
  %s2 = inlined_call_operand.vmem [shape: f32[1,128], index: 2, kind: output, shape index: {}]
  %s3 = sld [smem:[#allocation0]]
  $region22: #{mlp_forward.1} parent=0
    _
  %s5 = ssub.s32 1, %s3
  %s6 = scalar_select 0, %s5, %s3
  $region1: #{mlp_forward.1} parent=0
    #allocation2 [shape = 'u8[20480]{0}', space=vmem, size = 0x5000, scoped, tag = 'input window, operand 0, single buffered']
    #allocation3 [shape = 's32[1]{0}', space=sflag, size = 0x4, scoped, tag = 'scoped memory for mlp_forward.1']
    %7 = vsyncpa [#allocation3], 0
    // Predicated region
    $region2: #{mlp_forward.1} parent=1 // pred_check
      _
    $region3: #{mlp_forward.1} parent=1 // pred_check_branch
      %9 = sbr.rel (0) target = $region5
    $region4: #{mlp_forward.1} parent=1 // pred_region
      %s11 = ssub.s32 640, 640
      %12 = vsyncadd [#allocation3], %s11
      %s13 = sshll.u32 [#allocation2], 4
      %s14 = int_to_ptr.vmem [resolvable:$true] %s13
      %19 = dma.hbm_to_vmem [thread:$0]  %s0, 640, %s14, [#allocation3], 128, 128, 8
    $region5: #{mlp_forward.1} parent=1 // pred_fallthru
      _
    // Predicated region
    $region6: #{mlp_forward.1} parent=1 // pred_check
      _
    $region7: #{mlp_forward.1} parent=1 // pred_check_branch
      %21 = sbr.rel (0) target = $region9
    $region8: #{mlp_forward.1} parent=1 // pred_region
      _
    $region9: #{mlp_forward.1} parent=1 // pred_fallthru
      _
    // Predicated region
    $region10: #{mlp_forward.1} parent=1 // pred_check
      _
    $region11: #{mlp_forward.1} parent=1 // pred_check_branch
      %23 = sbr.rel (0) target = $region13
    $region12: #{mlp_forward.1} parent=1 // pred_region
      %24 = dma.done [#allocation3], 640
    $region13: #{mlp_forward.1} parent=1 // pred_fallthru
      _
    %v25 = vld [vmem:[%s1] sm:$0x1]
    %v26 = vld [vmem:[#allocation2] sm:$0xff]
    %v27 = vld [vmem:[#allocation2 + $0x8] sm:$0xff]
    %v28 = vld [vmem:[#allocation2 + $0x10] sm:$0xff]
    %v29 = vld [vmem:[#allocation2 + $0x18] sm:$0xff]
    %v30 = vld [vmem:[#allocation2 + $0x20] sm:$0xff]
    %v31 = vld [vmem:[#allocation2 + $0x18] sm:$0x3f]
    %v32 = vld [vmem:[#allocation2] sm:$0x1]
    %34 = vset.pattern.permute.xlu0 30
    %35 = vperm.xlu0 %34, %v26
    %v36 = vpop.permute.xlu0 %35
    %39 = vset.pattern.permute.xlu0 30
    %40 = vperm.xlu0 %39, %v27
    %v41 = vpop.permute.xlu0 %40
    %44 = vset.pattern.permute.xlu0 30
    %45 = vperm.xlu0 %44, %v28
    %v46 = vpop.permute.xlu0 %45
    %49 = vset.pattern.permute.xlu0 30
    %50 = vperm.xlu0 %49, %v31
    %v51 = vpop.permute.xlu0 %50
    %v54 = vlaneseq
    %v55 = vshrl.u32 %v54, 7
    %v56 = vsub.s32 0, %v55
    %v57 = vrot.slane %v25, %v56
    %v59 = vmul.f32 %v36, %v57
    %v60 = vmul.f32 %v41, %v57
    %v61 = vmul.f32 %v46, %v57
    %v62 = vmul.f32 %v51, %v57
    %63 = vset.pattern.permute.xlu0 31
    %64 = vperm.xlu0 %63, %v26
    %v65 = vpop.permute.xlu0 %64
    %67 = vset.pattern.permute.xlu0 31
    %68 = vperm.xlu0 %67, %v27
    %v69 = vpop.permute.xlu0 %68
    %71 = vset.pattern.permute.xlu0 31
    %72 = vperm.xlu0 %71, %v28
    %v73 = vpop.permute.xlu0 %72
    %75 = vset.pattern.permute.xlu0 31
    %76 = vperm.xlu0 %75, %v31
    %v77 = vpop.permute.xlu0 %76
    %v79 = vadd.f32 %v59, %v65
    %v80 = vadd.f32 %v60, %v69
    %v81 = vadd.f32 %v61, %v73
    %v82 = vadd.f32 %v62, %v77
    %v83 = vmul.f32 %v79, 0.5
    %v84 = vmul.f32 %v80, 0.5
    %v85 = vmul.f32 %v81, 0.5
    %v86 = vmul.f32 %v82, 0.5
    %v87 = vtanh.pop %v83
    %v88 = vtanh.pop %v84
    %v89 = vtanh.pop %v85
    %v90 = vtanh.pop %v86
    %v91 = vmul.f32 %v87, 0.5
    %v92 = vmul.f32 %v88, 0.5
    %v93 = vmul.f32 %v89, 0.5
    %v94 = vmul.f32 %v90, 0.5
    %v95 = vadd.f32 %v91, 0.5
    %v96 = vadd.f32 %v92, 0.5
    %v97 = vadd.f32 %v93, 0.5
    %v98 = vadd.f32 %v94, 0.5
    %99 = vset.pattern.permute.xlu0 32
    %100 = vperm.xlu0 %99, %v26
    %v101 = vpop.permute.xlu0 %100
    %103 = vset.pattern.permute.xlu0 32
    %104 = vperm.xlu0 %103, %v27
    %v105 = vpop.permute.xlu0 %104
    %107 = vset.pattern.permute.xlu0 32
    %108 = vperm.xlu0 %107, %v28
    %v109 = vpop.permute.xlu0 %108
    %112 = vset.pattern.permute.xlu0 32
    %113 = vperm.xlu0 %112, %v29
    %v114 = vpop.permute.xlu0 %113
    %117 = vset.pattern.permute.xlu0 32
    %118 = vperm.xlu0 %117, %v30
    %v119 = vpop.permute.xlu0 %118
    %vm121 = vcmask 244736
    %v122 = vsel %vm121, %v26, 0
    %v124 = vsel %vm121, %v27, 0
    %v126 = vsel %vm121, %v28, 0
    %v128 = vsel %vm121, %v29, 0
    %v130 = vsel %vm121, %v30, 0
    %vm132 = vcmask 1045504
    %v134 = vsel %vm132, %v98, 0
    %136 = vmatprep.subr.mxu0 0.0
    %137 = vmatpush1.msra.mxu0 0.0
    %138 = vmatprep.subr.mxu0 0.0
    %139 = vmatpush1.msra.mxu0 0.0
    %140 = vmatprep.subr.mxu0 0.0
    %141 = vmatpush1.msra.mxu0 0.0
    %142 = vmatprep.subr.mxu0 0.0
    %143 = vmatpush1.msra.mxu0 0.0
    %144 = vmatprep.subr.mxu0 0.0
    %145 = vmatpush1.msra.mxu0 0.0
    %146 = vmatprep.subr.mxu0 0.0
    %147 = vmatpush1.msra.mxu0 0.0
    %148 = vmatprep.subr.mxu0 0.0
    %149 = vmatpush1.msra.mxu0 0.0
    %150 = vmatprep.subr.mxu0 0.0
    %151 = vmatpush1.msra.mxu0 0.0
    %152 = vmatprep.subr.mxu0 0.0
    %153 = vmatpush1.msra.mxu0 0.0
    %154 = vmatprep.subr.mxu0 0.0
    %155 = vmatpush1.msra.mxu0 0.0
    %156 = vmatprep.subr.mxu0 0.0
    %157 = vmatpush1.msra.mxu0 0.0
    %158 = vmatprep.subr.mxu0 0.0
    %159 = vmatpush1.msra.mxu0 0.0
    %160 = vmatprep.subr.mxu0 0.0
    %v161 = vand.u32 %v134, 4294901760
    %162 = vmatpush1.msra.mxu0 %v161
    %163 = vmatprep.subr.mxu0 0.0
    %v164 = vand.u32 %v97, 4294901760
    %165 = vmatpush1.msra.mxu0 %v164
    %166 = vmatprep.subr.mxu0 0.0
    %v167 = vand.u32 %v96, 4294901760
    %168 = vmatpush1.msra.mxu0 %v167
    %169 = vmatprep.subr.mxu0 0.0
    %v170 = vand.u32 %v95, 4294901760
    %171 = vmatpush1.msra.mxu0 %v170
    %172 = vmatprep.subr.mxu0 0.0
    %173 = vmatpush2.msra.mxu0 0.0
    %174 = vmatprep.subr.mxu0 0.0
    %175 = vmatpush2.msra.mxu0 0.0
    %176 = vmatprep.subr.mxu0 0.0
    %177 = vmatpush2.msra.mxu0 0.0
    %178 = vmatprep.subr.mxu0 0.0
    %179 = vmatpush2.msra.mxu0 0.0
    %180 = vmatprep.subr.mxu0 0.0
    %181 = vmatpush2.msra.mxu0 0.0
    %182 = vmatprep.subr.mxu0 0.0
    %183 = vmatpush2.msra.mxu0 0.0
    %184 = vmatprep.subr.mxu0 0.0
    %185 = vmatpush2.msra.mxu0 0.0
    %186 = vmatprep.subr.mxu0 0.0
    %187 = vmatpush2.msra.mxu0 0.0
    %188 = vmatprep.subr.mxu0 0.0
    %189 = vmatpush2.msra.mxu0 0.0
    %190 = vmatprep.subr.mxu0 0.0
    %191 = vmatpush2.msra.mxu0 0.0
    %192 = vmatprep.subr.mxu0 0.0
    %193 = vmatpush2.msra.mxu0 0.0
    %194 = vmatprep.subr.mxu0 0.0
    %195 = vmatpush2.msra.mxu0 0.0
    %196 = vmatprep.subr.mxu0 0.0
    %197 = vmatpush2.msra.mxu0 0.0
    %198 = vmatprep.subr.mxu0 0.0
    %199 = vmatpush2.msra.mxu0 0.0
    %200 = vmatprep.subr.mxu0 0.0
    %201 = vmatpush2.msra.mxu0 0.0
    %202 = vmatprep.subr.mxu0 0.0
    %203 = vmatpush2.msra.mxu0 0.0
    %204 = vmatprep.mubr.f32.mxu0 0.0
    %v205 = vand.u32 %v122, 4294901760
    %v206 = vsub.f32 %v122, %v205
    %v207 = vand.u32 %v206, 4294901760
    %v208 = vsub.f32 %v206, %v207
    %v209 = vand.u32 %v208, 4294901760
    %210 = vmatmul.mubr.f32.gmra.mxu0 %v209
    %v211 = vpop.f32.mrf.mxu0
    %v212 = vadd.f32 %v101, %v211
    %v213 = vpop.f32.mrf.mxu0
    %214 = vmatprep.mubr.f32.mxu0 0.0
    %v215 = vand.u32 %v124, 4294901760
    %v216 = vsub.f32 %v124, %v215
    %v217 = vand.u32 %v216, 4294901760
    %v218 = vsub.f32 %v216, %v217
    %v219 = vand.u32 %v218, 4294901760
    %220 = vmatmul.mubr.f32.gmra.mxu0 %v219
    %v221 = vpop.f32.mrf.mxu0
    %v222 = vadd.f32 %v105, %v221
    %v223 = vpop.f32.mrf.mxu0
    %224 = vmatprep.mubr.f32.mxu0 0.0
    %v225 = vand.u32 %v126, 4294901760
    %v226 = vsub.f32 %v126, %v225
    %v227 = vand.u32 %v226, 4294901760
    %v228 = vsub.f32 %v226, %v227
    %v229 = vand.u32 %v228, 4294901760
    %230 = vmatmul.mubr.f32.gmra.mxu0 %v229
    %v231 = vpop.f32.mrf.mxu0
    %v232 = vadd.f32 %v109, %v231
    %v233 = vpop.f32.mrf.mxu0
    %234 = vmatprep.mubr.f32.mxu0 0.0
    %v235 = vand.u32 %v128, 4294901760
    %v236 = vsub.f32 %v128, %v235
    %v237 = vand.u32 %v236, 4294901760
    %v238 = vsub.f32 %v236, %v237
    %v239 = vand.u32 %v238, 4294901760
    %240 = vmatmul.mubr.f32.gmra.mxu0 %v239
    %v241 = vpop.f32.mrf.mxu0
    %v242 = vadd.f32 %v114, %v241
    %v243 = vpop.f32.mrf.mxu0
    %244 = vmatprep.mubr.f32.mxu0 0.0
    %v245 = vand.u32 %v130, 4294901760
    %v246 = vsub.f32 %v130, %v245
    %v247 = vand.u32 %v246, 4294901760
    %v248 = vsub.f32 %v246, %v247
    %v249 = vand.u32 %v248, 4294901760
    %250 = vmatmul.mubr.f32.gmra.mxu0 %v249
    %v251 = vpop.f32.mrf.mxu0
    %v252 = vadd.f32 %v119, %v251
    %v253 = vpop.f32.mrf.mxu0
    %254 = vdwg.mxu0
    %255 = vmatprep.subr.mxu0 0.0
    %256 = vmatpush1.msra.mxu0 0.0
    %257 = vmatprep.subr.mxu0 0.0
    %258 = vmatpush1.msra.mxu0 0.0
    %259 = vmatprep.subr.mxu0 0.0
    %260 = vmatpush1.msra.mxu0 0.0
    %261 = vmatprep.subr.mxu0 0.0
    %262 = vmatpush1.msra.mxu0 0.0
    %263 = vmatprep.subr.mxu0 0.0
    %264 = vmatpush1.msra.mxu0 0.0
    %265 = vmatprep.subr.mxu0 0.0
    %266 = vmatpush1.msra.mxu0 0.0
    %267 = vmatprep.subr.mxu0 0.0
    %268 = vmatpush1.msra.mxu0 0.0
    %269 = vmatprep.subr.mxu0 0.0
    %270 = vmatpush1.msra.mxu0 0.0
    %271 = vmatprep.subr.mxu0 0.0
    %272 = vmatpush1.msra.mxu0 0.0
    %273 = vmatprep.subr.mxu0 0.0
    %274 = vmatpush1.msra.mxu0 0.0
    %275 = vmatprep.subr.mxu0 0.0
    %276 = vmatpush1.msra.mxu0 0.0
    %277 = vmatprep.subr.mxu0 0.0
    %278 = vmatpush1.msra.mxu0 0.0
    %279 = vmatprep.subr.mxu0 0.0
    %v280 = vand.u32 %v134, 4294901760
    %v281 = vsub.f32 %v134, %v280
    %v282 = vand.u32 %v281, 4294901760
    %v283 = vsub.f32 %v281, %v282
    %v284 = vand.u32 %v283, 4294901760
    %285 = vmatpush1.msra.mxu0 %v284
    %286 = vmatprep.subr.mxu0 0.0
    %v287 = vand.u32 %v97, 4294901760
    %v288 = vsub.f32 %v97, %v287
    %v289 = vand.u32 %v288, 4294901760
    %v290 = vsub.f32 %v288, %v289
    %v291 = vand.u32 %v290, 4294901760
    %292 = vmatpush1.msra.mxu0 %v291
    %293 = vmatprep.subr.mxu0 0.0
    %v294 = vand.u32 %v96, 4294901760
    %v295 = vsub.f32 %v96, %v294
    %v296 = vand.u32 %v295, 4294901760
    %v297 = vsub.f32 %v295, %v296
    %v298 = vand.u32 %v297, 4294901760
    %299 = vmatpush1.msra.mxu0 %v298
    %300 = vmatprep.subr.mxu0 0.0
    %v301 = vand.u32 %v95, 4294901760
    %v302 = vsub.f32 %v95, %v301
    %v303 = vand.u32 %v302, 4294901760
    %v304 = vsub.f32 %v302, %v303
    %v305 = vand.u32 %v304, 4294901760
    %306 = vmatpush1.msra.mxu0 %v305
    %307 = vmatprep.subr.mxu0 0.0
    %308 = vmatpush2.msra.mxu0 0.0
    %309 = vmatprep.subr.mxu0 0.0
    %310 = vmatpush2.msra.mxu0 0.0
    %311 = vmatprep.subr.mxu0 0.0
    %312 = vmatpush2.msra.mxu0 0.0
    %313 = vmatprep.subr.mxu0 0.0
    %314 = vmatpush2.msra.mxu0 0.0
    %315 = vmatprep.subr.mxu0 0.0
    %316 = vmatpush2.msra.mxu0 0.0
    %317 = vmatprep.subr.mxu0 0.0
    %318 = vmatpush2.msra.mxu0 0.0
    %319 = vmatprep.subr.mxu0 0.0
    %320 = vmatpush2.msra.mxu0 0.0
    %321 = vmatprep.subr.mxu0 0.0
    %322 = vmatpush2.msra.mxu0 0.0
    %323 = vmatprep.subr.mxu0 0.0
    %324 = vmatpush2.msra.mxu0 0.0
    %325 = vmatprep.subr.mxu0 0.0
    %326 = vmatpush2.msra.mxu0 0.0
    %327 = vmatprep.subr.mxu0 0.0
    %328 = vmatpush2.msra.mxu0 0.0
    %329 = vmatprep.subr.mxu0 0.0
    %330 = vmatpush2.msra.mxu0 0.0
    %331 = vmatprep.subr.mxu0 0.0
    %332 = vmatpush2.msra.mxu0 0.0
    %333 = vmatprep.subr.mxu0 0.0
    %334 = vmatpush2.msra.mxu0 0.0
    %335 = vmatprep.subr.mxu0 0.0
    %336 = vmatpush2.msra.mxu0 0.0
    %337 = vmatprep.subr.mxu0 0.0
    %338 = vmatpush2.msra.mxu0 0.0
    %339 = vmatprep.mubr.f32.mxu0 0.0
    %v340 = vand.u32 %v122, 4294901760
    %341 = vmatmul.mubr.f32.gmra.mxu0 %v340
    %v342 = vpop.f32.mrf.mxu0
    %v343 = vadd.f32 %v212, %v342
    %v344 = vpop.f32.mrf.mxu0
    %345 = vmatprep.mubr.f32.mxu0 0.0
    %v346 = vand.u32 %v124, 4294901760
    %347 = vmatmul.mubr.f32.gmra.mxu0 %v346
    %v348 = vpop.f32.mrf.mxu0
    %v349 = vadd.f32 %v222, %v348
    %v350 = vpop.f32.mrf.mxu0
    %351 = vmatprep.mubr.f32.mxu0 0.0
    %v352 = vand.u32 %v126, 4294901760
    %353 = vmatmul.mubr.f32.gmra.mxu0 %v352
    %v354 = vpop.f32.mrf.mxu0
    %v355 = vadd.f32 %v232, %v354
    %v356 = vpop.f32.mrf.mxu0
    %357 = vmatprep.mubr.f32.mxu0 0.0
    %v358 = vand.u32 %v128, 4294901760
    %359 = vmatmul.mubr.f32.gmra.mxu0 %v358
    %v360 = vpop.f32.mrf.mxu0
    %v361 = vadd.f32 %v242, %v360
    %v362 = vpop.f32.mrf.mxu0
    %363 = vmatprep.mubr.f32.mxu0 0.0
    %v364 = vand.u32 %v130, 4294901760
    %365 = vmatmul.mubr.f32.gmra.mxu0 %v364
    %v366 = vpop.f32.mrf.mxu0
    %v367 = vadd.f32 %v252, %v366
    %v368 = vpop.f32.mrf.mxu0
    %369 = vdwg.mxu0
    %370 = vmatprep.subr.mxu0 0.0
    %371 = vmatpush1.msra.mxu0 0.0
    %372 = vmatprep.subr.mxu0 0.0
    %373 = vmatpush1.msra.mxu0 0.0
    %374 = vmatprep.subr.mxu0 0.0
    %375 = vmatpush1.msra.mxu0 0.0
    %376 = vmatprep.subr.mxu0 0.0
    %377 = vmatpush1.msra.mxu0 0.0
    %378 = vmatprep.subr.mxu0 0.0
    %379 = vmatpush1.msra.mxu0 0.0
    %380 = vmatprep.subr.mxu0 0.0
    %381 = vmatpush1.msra.mxu0 0.0
    %382 = vmatprep.subr.mxu0 0.0
    %383 = vmatpush1.msra.mxu0 0.0
    %384 = vmatprep.subr.mxu0 0.0
    %385 = vmatpush1.msra.mxu0 0.0
    %386 = vmatprep.subr.mxu0 0.0
    %387 = vmatpush1.msra.mxu0 0.0
    %388 = vmatprep.subr.mxu0 0.0
    %389 = vmatpush1.msra.mxu0 0.0
    %390 = vmatprep.subr.mxu0 0.0
    %391 = vmatpush1.msra.mxu0 0.0
    %392 = vmatprep.subr.mxu0 0.0
    %393 = vmatpush1.msra.mxu0 0.0
    %394 = vmatprep.subr.mxu0 0.0
    %v395 = vand.u32 %v134, 4294901760
    %v396 = vsub.f32 %v134, %v395
    %397 = vmatpush1.msra.mxu0 %v396
    %398 = vmatprep.subr.mxu0 0.0
    %v399 = vand.u32 %v97, 4294901760
    %v400 = vsub.f32 %v97, %v399
    %401 = vmatpush1.msra.mxu0 %v400
    %402 = vmatprep.subr.mxu0 0.0
    %v403 = vand.u32 %v96, 4294901760
    %v404 = vsub.f32 %v96, %v403
    %405 = vmatpush1.msra.mxu0 %v404
    %406 = vmatprep.subr.mxu0 0.0
    %v407 = vand.u32 %v95, 4294901760
    %v408 = vsub.f32 %v95, %v407
    %409 = vmatpush1.msra.mxu0 %v408
    %410 = vmatprep.subr.mxu0 0.0
    %411 = vmatpush2.msra.mxu0 0.0
    %412 = vmatprep.subr.mxu0 0.0
    %413 = vmatpush2.msra.mxu0 0.0
    %414 = vmatprep.subr.mxu0 0.0
    %415 = vmatpush2.msra.mxu0 0.0
    %416 = vmatprep.subr.mxu0 0.0
    %417 = vmatpush2.msra.mxu0 0.0
    %418 = vmatprep.subr.mxu0 0.0
    %419 = vmatpush2.msra.mxu0 0.0
    %420 = vmatprep.subr.mxu0 0.0
    %421 = vmatpush2.msra.mxu0 0.0
    %422 = vmatprep.subr.mxu0 0.0
    %423 = vmatpush2.msra.mxu0 0.0
    %424 = vmatprep.subr.mxu0 0.0
    %425 = vmatpush2.msra.mxu0 0.0
    %426 = vmatprep.subr.mxu0 0.0
    %427 = vmatpush2.msra.mxu0 0.0
    %428 = vmatprep.subr.mxu0 0.0
    %429 = vmatpush2.msra.mxu0 0.0
    %430 = vmatprep.subr.mxu0 0.0
    %431 = vmatpush2.msra.mxu0 0.0
    %432 = vmatprep.subr.mxu0 0.0
    %433 = vmatpush2.msra.mxu0 0.0
    %434 = vmatprep.subr.mxu0 0.0
    %435 = vmatpush2.msra.mxu0 0.0
    %436 = vmatprep.subr.mxu0 0.0
    %437 = vmatpush2.msra.mxu0 0.0
    %438 = vmatprep.subr.mxu0 0.0
    %439 = vmatpush2.msra.mxu0 0.0
    %440 = vmatprep.subr.mxu0 0.0
    %441 = vmatpush2.msra.mxu0 0.0
    %442 = vmatprep.mubr.f32.mxu0 0.0
    %v443 = vand.u32 %v122, 4294901760
    %v444 = vsub.f32 %v122, %v443
    %445 = vmatmul.mubr.f32.gmra.mxu0 %v444
    %v446 = vpop.f32.mrf.mxu0
    %v447 = vadd.f32 %v343, %v446
    %v448 = vpop.f32.mrf.mxu0
    %449 = vmatprep.mubr.f32.mxu0 0.0
    %v450 = vand.u32 %v124, 4294901760
    %v451 = vsub.f32 %v124, %v450
    %452 = vmatmul.mubr.f32.gmra.mxu0 %v451
    %v453 = vpop.f32.mrf.mxu0
    %v454 = vadd.f32 %v349, %v453
    %v455 = vpop.f32.mrf.mxu0
    %456 = vmatprep.mubr.f32.mxu0 0.0
    %v457 = vand.u32 %v126, 4294901760
    %v458 = vsub.f32 %v126, %v457
    %459 = vmatmul.mubr.f32.gmra.mxu0 %v458
    %v460 = vpop.f32.mrf.mxu0
    %v461 = vadd.f32 %v355, %v460
    %v462 = vpop.f32.mrf.mxu0
    %463 = vmatprep.mubr.f32.mxu0 0.0
    %v464 = vand.u32 %v128, 4294901760
    %v465 = vsub.f32 %v128, %v464
    %466 = vmatmul.mubr.f32.gmra.mxu0 %v465
    %v467 = vpop.f32.mrf.mxu0
    %v468 = vadd.f32 %v361, %v467
    %v469 = vpop.f32.mrf.mxu0
    %470 = vmatprep.mubr.f32.mxu0 0.0
    %v471 = vand.u32 %v130, 4294901760
    %v472 = vsub.f32 %v130, %v471
    %473 = vmatmul.mubr.f32.gmra.mxu0 %v472
    %v474 = vpop.f32.mrf.mxu0
    %v475 = vadd.f32 %v367, %v474
    %v476 = vpop.f32.mrf.mxu0
    %477 = vdwg.mxu0
    %478 = vmatprep.subr.mxu0 0.0
    %479 = vmatpush1.msra.mxu0 0.0
    %480 = vmatprep.subr.mxu0 0.0
    %481 = vmatpush1.msra.mxu0 0.0
    %482 = vmatprep.subr.mxu0 0.0
    %483 = vmatpush1.msra.mxu0 0.0
    %484 = vmatprep.subr.mxu0 0.0
    %485 = vmatpush1.msra.mxu0 0.0
    %486 = vmatprep.subr.mxu0 0.0
    %487 = vmatpush1.msra.mxu0 0.0
    %488 = vmatprep.subr.mxu0 0.0
    %489 = vmatpush1.msra.mxu0 0.0
    %490 = vmatprep.subr.mxu0 0.0
    %491 = vmatpush1.msra.mxu0 0.0
    %492 = vmatprep.subr.mxu0 0.0
    %493 = vmatpush1.msra.mxu0 0.0
    %494 = vmatprep.subr.mxu0 0.0
    %495 = vmatpush1.msra.mxu0 0.0
    %496 = vmatprep.subr.mxu0 0.0
    %497 = vmatpush1.msra.mxu0 0.0
    %498 = vmatprep.subr.mxu0 0.0
    %499 = vmatpush1.msra.mxu0 0.0
    %500 = vmatprep.subr.mxu0 0.0
    %501 = vmatpush1.msra.mxu0 0.0
    %502 = vmatprep.subr.mxu0 0.0
    %v503 = vand.u32 %v134, 4294901760
    %504 = vmatpush1.msra.mxu0 %v503
    %505 = vmatprep.subr.mxu0 0.0
    %v506 = vand.u32 %v97, 4294901760
    %507 = vmatpush1.msra.mxu0 %v506
    %508 = vmatprep.subr.mxu0 0.0
    %v509 = vand.u32 %v96, 4294901760
    %510 = vmatpush1.msra.mxu0 %v509
    %511 = vmatprep.subr.mxu0 0.0
    %v512 = vand.u32 %v95, 4294901760
    %513 = vmatpush1.msra.mxu0 %v512
    %514 = vmatprep.subr.mxu0 0.0
    %515 = vmatpush2.msra.mxu0 0.0
    %516 = vmatprep.subr.mxu0 0.0
    %517 = vmatpush2.msra.mxu0 0.0
    %518 = vmatprep.subr.mxu0 0.0
    %519 = vmatpush2.msra.mxu0 0.0
    %520 = vmatprep.subr.mxu0 0.0
    %521 = vmatpush2.msra.mxu0 0.0
    %522 = vmatprep.subr.mxu0 0.0
    %523 = vmatpush2.msra.mxu0 0.0
    %524 = vmatprep.subr.mxu0 0.0
    %525 = vmatpush2.msra.mxu0 0.0
    %526 = vmatprep.subr.mxu0 0.0
    %527 = vmatpush2.msra.mxu0 0.0
    %528 = vmatprep.subr.mxu0 0.0
    %529 = vmatpush2.msra.mxu0 0.0
    %530 = vmatprep.subr.mxu0 0.0
    %531 = vmatpush2.msra.mxu0 0.0
    %532 = vmatprep.subr.mxu0 0.0
    %533 = vmatpush2.msra.mxu0 0.0
    %534 = vmatprep.subr.mxu0 0.0
    %535 = vmatpush2.msra.mxu0 0.0
    %536 = vmatprep.subr.mxu0 0.0
    %537 = vmatpush2.msra.mxu0 0.0
    %538 = vmatprep.subr.mxu0 0.0
    %539 = vmatpush2.msra.mxu0 0.0
    %540 = vmatprep.subr.mxu0 0.0
    %541 = vmatpush2.msra.mxu0 0.0
    %542 = vmatprep.subr.mxu0 0.0
    %543 = vmatpush2.msra.mxu0 0.0
    %544 = vmatprep.subr.mxu0 0.0
    %545 = vmatpush2.msra.mxu0 0.0
    %546 = vmatprep.mubr.f32.mxu0 0.0
    %v547 = vand.u32 %v122, 4294901760
    %v548 = vsub.f32 %v122, %v547
    %v549 = vand.u32 %v548, 4294901760
    %550 = vmatmul.mubr.f32.gmra.mxu0 %v549
    %v551 = vpop.f32.mrf.mxu0
    %v552 = vadd.f32 %v447, %v551
    %v553 = vpop.f32.mrf.mxu0
    %554 = vmatprep.mubr.f32.mxu0 0.0
    %v555 = vand.u32 %v124, 4294901760
    %v556 = vsub.f32 %v124, %v555
    %v557 = vand.u32 %v556, 4294901760
    %558 = vmatmul.mubr.f32.gmra.mxu0 %v557
    %v559 = vpop.f32.mrf.mxu0
    %v560 = vadd.f32 %v454, %v559
    %v561 = vpop.f32.mrf.mxu0
    %562 = vmatprep.mubr.f32.mxu0 0.0
    %v563 = vand.u32 %v126, 4294901760
    %v564 = vsub.f32 %v126, %v563
    %v565 = vand.u32 %v564, 4294901760
    %566 = vmatmul.mubr.f32.gmra.mxu0 %v565
    %v567 = vpop.f32.mrf.mxu0
    %v568 = vadd.f32 %v461, %v567
    %v569 = vpop.f32.mrf.mxu0
    %570 = vmatprep.mubr.f32.mxu0 0.0
    %v571 = vand.u32 %v128, 4294901760
    %v572 = vsub.f32 %v128, %v571
    %v573 = vand.u32 %v572, 4294901760
    %574 = vmatmul.mubr.f32.gmra.mxu0 %v573
    %v575 = vpop.f32.mrf.mxu0
    %v576 = vadd.f32 %v468, %v575
    %v577 = vpop.f32.mrf.mxu0
    %578 = vmatprep.mubr.f32.mxu0 0.0
    %v579 = vand.u32 %v130, 4294901760
    %v580 = vsub.f32 %v130, %v579
    %v581 = vand.u32 %v580, 4294901760
    %582 = vmatmul.mubr.f32.gmra.mxu0 %v581
    %v583 = vpop.f32.mrf.mxu0
    %v584 = vadd.f32 %v475, %v583
    %v585 = vpop.f32.mrf.mxu0
    %586 = vdwg.mxu0
    %587 = vmatprep.subr.mxu0 0.0
    %588 = vmatpush1.msra.mxu0 0.0
    %589 = vmatprep.subr.mxu0 0.0
    %590 = vmatpush1.msra.mxu0 0.0
    %591 = vmatprep.subr.mxu0 0.0
    %592 = vmatpush1.msra.mxu0 0.0
    %593 = vmatprep.subr.mxu0 0.0
    %594 = vmatpush1.msra.mxu0 0.0
    %595 = vmatprep.subr.mxu0 0.0
    %596 = vmatpush1.msra.mxu0 0.0
    %597 = vmatprep.subr.mxu0 0.0
    %598 = vmatpush1.msra.mxu0 0.0
    %599 = vmatprep.subr.mxu0 0.0
    %600 = vmatpush1.msra.mxu0 0.0
    %601 = vmatprep.subr.mxu0 0.0
    %602 = vmatpush1.msra.mxu0 0.0
    %603 = vmatprep.subr.mxu0 0.0
    %604 = vmatpush1.msra.mxu0 0.0
    %605 = vmatprep.subr.mxu0 0.0
    %606 = vmatpush1.msra.mxu0 0.0
    %607 = vmatprep.subr.mxu0 0.0
    %608 = vmatpush1.msra.mxu0 0.0
    %609 = vmatprep.subr.mxu0 0.0
    %610 = vmatpush1.msra.mxu0 0.0
    %611 = vmatprep.subr.mxu0 0.0
    %v612 = vand.u32 %v134, 4294901760
    %v613 = vsub.f32 %v134, %v612
    %v614 = vand.u32 %v613, 4294901760
    %615 = vmatpush1.msra.mxu0 %v614
    %616 = vmatprep.subr.mxu0 0.0
    %v617 = vand.u32 %v97, 4294901760
    %v618 = vsub.f32 %v97, %v617
    %v619 = vand.u32 %v618, 4294901760
    %620 = vmatpush1.msra.mxu0 %v619
    %621 = vmatprep.subr.mxu0 0.0
    %v622 = vand.u32 %v96, 4294901760
    %v623 = vsub.f32 %v96, %v622
    %v624 = vand.u32 %v623, 4294901760
    %625 = vmatpush1.msra.mxu0 %v624
    %626 = vmatprep.subr.mxu0 0.0
    %v627 = vand.u32 %v95, 4294901760
    %v628 = vsub.f32 %v95, %v627
    %v629 = vand.u32 %v628, 4294901760
    %630 = vmatpush1.msra.mxu0 %v629
    %631 = vmatprep.subr.mxu0 0.0
    %632 = vmatpush2.msra.mxu0 0.0
    %633 = vmatprep.subr.mxu0 0.0
    %634 = vmatpush2.msra.mxu0 0.0
    %635 = vmatprep.subr.mxu0 0.0
    %636 = vmatpush2.msra.mxu0 0.0
    %637 = vmatprep.subr.mxu0 0.0
    %638 = vmatpush2.msra.mxu0 0.0
    %639 = vmatprep.subr.mxu0 0.0
    %640 = vmatpush2.msra.mxu0 0.0
    %641 = vmatprep.subr.mxu0 0.0
    %642 = vmatpush2.msra.mxu0 0.0
    %643 = vmatprep.subr.mxu0 0.0
    %644 = vmatpush2.msra.mxu0 0.0
    %645 = vmatprep.subr.mxu0 0.0
    %646 = vmatpush2.msra.mxu0 0.0
    %647 = vmatprep.subr.mxu0 0.0
    %648 = vmatpush2.msra.mxu0 0.0
    %649 = vmatprep.subr.mxu0 0.0
    %650 = vmatpush2.msra.mxu0 0.0
    %651 = vmatprep.subr.mxu0 0.0
    %652 = vmatpush2.msra.mxu0 0.0
    %653 = vmatprep.subr.mxu0 0.0
    %654 = vmatpush2.msra.mxu0 0.0
    %655 = vmatprep.subr.mxu0 0.0
    %656 = vmatpush2.msra.mxu0 0.0
    %657 = vmatprep.subr.mxu0 0.0
    %658 = vmatpush2.msra.mxu0 0.0
    %659 = vmatprep.subr.mxu0 0.0
    %660 = vmatpush2.msra.mxu0 0.0
    %661 = vmatprep.subr.mxu0 0.0
    %662 = vmatpush2.msra.mxu0 0.0
    %663 = vmatprep.mubr.f32.mxu0 0.0
    %v664 = vand.u32 %v122, 4294901760
    %665 = vmatmul.mubr.f32.gmra.mxu0 %v664
    %v666 = vpop.f32.mrf.mxu0
    %v667 = vadd.f32 %v552, %v666
    %v668 = vpop.f32.mrf.mxu0
    %669 = vmatprep.mubr.f32.mxu0 0.0
    %v670 = vand.u32 %v124, 4294901760
    %671 = vmatmul.mubr.f32.gmra.mxu0 %v670
    %v672 = vpop.f32.mrf.mxu0
    %v673 = vadd.f32 %v560, %v672
    %v674 = vpop.f32.mrf.mxu0
    %675 = vmatprep.mubr.f32.mxu0 0.0
    %v676 = vand.u32 %v126, 4294901760
    %677 = vmatmul.mubr.f32.gmra.mxu0 %v676
    %v678 = vpop.f32.mrf.mxu0
    %v679 = vadd.f32 %v568, %v678
    %v680 = vpop.f32.mrf.mxu0
    %681 = vmatprep.mubr.f32.mxu0 0.0
    %v682 = vand.u32 %v128, 4294901760
    %683 = vmatmul.mubr.f32.gmra.mxu0 %v682
    %v684 = vpop.f32.mrf.mxu0
    %v685 = vadd.f32 %v576, %v684
    %v686 = vpop.f32.mrf.mxu0
    %687 = vmatprep.mubr.f32.mxu0 0.0
    %v688 = vand.u32 %v130, 4294901760
    %689 = vmatmul.mubr.f32.gmra.mxu0 %v688
    %v690 = vpop.f32.mrf.mxu0
    %v691 = vadd.f32 %v584, %v690
    %v692 = vpop.f32.mrf.mxu0
    %693 = vdwg.mxu0
    %694 = vmatprep.subr.mxu0 0.0
    %695 = vmatpush1.msra.mxu0 0.0
    %696 = vmatprep.subr.mxu0 0.0
    %697 = vmatpush1.msra.mxu0 0.0
    %698 = vmatprep.subr.mxu0 0.0
    %699 = vmatpush1.msra.mxu0 0.0
    %700 = vmatprep.subr.mxu0 0.0
    %701 = vmatpush1.msra.mxu0 0.0
    %702 = vmatprep.subr.mxu0 0.0
    %703 = vmatpush1.msra.mxu0 0.0
    %704 = vmatprep.subr.mxu0 0.0
    %705 = vmatpush1.msra.mxu0 0.0
    %706 = vmatprep.subr.mxu0 0.0
    %707 = vmatpush1.msra.mxu0 0.0
    %708 = vmatprep.subr.mxu0 0.0
    %709 = vmatpush1.msra.mxu0 0.0
    %710 = vmatprep.subr.mxu0 0.0
    %711 = vmatpush1.msra.mxu0 0.0
    %712 = vmatprep.subr.mxu0 0.0
    %713 = vmatpush1.msra.mxu0 0.0
    %714 = vmatprep.subr.mxu0 0.0
    %715 = vmatpush1.msra.mxu0 0.0
    %716 = vmatprep.subr.mxu0 0.0
    %717 = vmatpush1.msra.mxu0 0.0
    %718 = vmatprep.subr.mxu0 0.0
    %v719 = vand.u32 %v134, 4294901760
    %720 = vmatpush1.msra.mxu0 %v719
    %721 = vmatprep.subr.mxu0 0.0
    %v722 = vand.u32 %v97, 4294901760
    %723 = vmatpush1.msra.mxu0 %v722
    %724 = vmatprep.subr.mxu0 0.0
    %v725 = vand.u32 %v96, 4294901760
    %726 = vmatpush1.msra.mxu0 %v725
    %727 = vmatprep.subr.mxu0 0.0
    %v728 = vand.u32 %v95, 4294901760
    %729 = vmatpush1.msra.mxu0 %v728
    %730 = vmatprep.subr.mxu0 0.0
    %731 = vmatpush2.msra.mxu0 0.0
    %732 = vmatprep.subr.mxu0 0.0
    %733 = vmatpush2.msra.mxu0 0.0
    %734 = vmatprep.subr.mxu0 0.0
    %735 = vmatpush2.msra.mxu0 0.0
    %736 = vmatprep.subr.mxu0 0.0
    %737 = vmatpush2.msra.mxu0 0.0
    %738 = vmatprep.subr.mxu0 0.0
    %739 = vmatpush2.msra.mxu0 0.0
    %740 = vmatprep.subr.mxu0 0.0
    %741 = vmatpush2.msra.mxu0 0.0
    %742 = vmatprep.subr.mxu0 0.0
    %743 = vmatpush2.msra.mxu0 0.0
    %744 = vmatprep.subr.mxu0 0.0
    %745 = vmatpush2.msra.mxu0 0.0
    %746 = vmatprep.subr.mxu0 0.0
    %747 = vmatpush2.msra.mxu0 0.0
    %748 = vmatprep.subr.mxu0 0.0
    %749 = vmatpush2.msra.mxu0 0.0
    %750 = vmatprep.subr.mxu0 0.0
    %751 = vmatpush2.msra.mxu0 0.0
    %752 = vmatprep.subr.mxu0 0.0
    %753 = vmatpush2.msra.mxu0 0.0
    %754 = vmatprep.subr.mxu0 0.0
    %755 = vmatpush2.msra.mxu0 0.0
    %756 = vmatprep.subr.mxu0 0.0
    %757 = vmatpush2.msra.mxu0 0.0
    %758 = vmatprep.subr.mxu0 0.0
    %759 = vmatpush2.msra.mxu0 0.0
    %760 = vmatprep.subr.mxu0 0.0
    %761 = vmatpush2.msra.mxu0 0.0
    %762 = vmatprep.mubr.f32.mxu0 0.0
    %v763 = vand.u32 %v122, 4294901760
    %764 = vmatmul.mubr.f32.gmra.mxu0 %v763
    %v765 = vpop.f32.mrf.mxu0
    %v766 = vadd.f32 %v667, %v765
    %v767 = vpop.f32.mrf.mxu0
    %768 = vmatprep.mubr.f32.mxu0 0.0
    %v769 = vand.u32 %v124, 4294901760
    %770 = vmatmul.mubr.f32.gmra.mxu0 %v769
    %v771 = vpop.f32.mrf.mxu0
    %v772 = vadd.f32 %v673, %v771
    %v773 = vpop.f32.mrf.mxu0
    %774 = vmatprep.mubr.f32.mxu0 0.0
    %v775 = vand.u32 %v126, 4294901760
    %776 = vmatmul.mubr.f32.gmra.mxu0 %v775
    %v777 = vpop.f32.mrf.mxu0
    %v778 = vadd.f32 %v679, %v777
    %v779 = vpop.f32.mrf.mxu0
    %780 = vmatprep.mubr.f32.mxu0 0.0
    %v781 = vand.u32 %v128, 4294901760
    %782 = vmatmul.mubr.f32.gmra.mxu0 %v781
    %v783 = vpop.f32.mrf.mxu0
    %v784 = vadd.f32 %v685, %v783
    %v785 = vpop.f32.mrf.mxu0
    %786 = vmatprep.mubr.f32.mxu0 0.0
    %v787 = vand.u32 %v130, 4294901760
    %788 = vmatmul.mubr.f32.gmra.mxu0 %v787
    %v789 = vpop.f32.mrf.mxu0
    %v790 = vadd.f32 %v691, %v789
    %v791 = vpop.f32.mrf.mxu0
    %792 = vdwg.mxu0
    %v793 = vmul.f32 %v766, 0.5
    %v794 = vmul.f32 %v772, 0.5
    %v795 = vmul.f32 %v778, 0.5
    %v796 = vmul.f32 %v784, 0.5
    %v797 = vmul.f32 %v790, 0.5
    %v798 = vtanh.pop %v793
    %v799 = vtanh.pop %v794
    %v800 = vtanh.pop %v795
    %v801 = vtanh.pop %v796
    %v802 = vtanh.pop %v797
    %v803 = vmul.f32 %v798, 0.5
    %v804 = vmul.f32 %v799, 0.5
    %v805 = vmul.f32 %v800, 0.5
    %v806 = vmul.f32 %v801, 0.5
    %v807 = vmul.f32 %v802, 0.5
    %v808 = vadd.f32 %v803, 0.5
    %v809 = vadd.f32 %v804, 0.5
    %v810 = vadd.f32 %v805, 0.5
    %v811 = vadd.f32 %v806, 0.5
    %v812 = vadd.f32 %v807, 0.5
    %813 = vset.pattern.permute.xlu0 33
    %814 = vperm.xlu0 %813, %v26
    %v815 = vpop.permute.xlu0 %814
    %817 = vset.pattern.permute.xlu0 33
    %818 = vperm.xlu0 %817, %v27
    %v819 = vpop.permute.xlu0 %818
    %821 = vset.pattern.permute.xlu0 33
    %822 = vperm.xlu0 %821, %v28
    %v823 = vpop.permute.xlu0 %822
    %825 = vset.pattern.permute.xlu0 33
    %826 = vperm.xlu0 %825, %v29
    %v827 = vpop.permute.xlu0 %826
    %829 = vset.pattern.permute.xlu0 33
    %830 = vperm.xlu0 %829, %v30
    %v831 = vpop.permute.xlu0 %830
    %v833 = vmul.f32 %v815, %v808
    %v834 = vmul.f32 %v819, %v809
    %v835 = vmul.f32 %v823, %v810
    %v836 = vmul.f32 %v827, %v811
    %v837 = vmul.f32 %v831, %v812
    %v838 = vadd.f32 %v833, %v834
    %v839 = vadd.f32 %v838, %v835
    %v840 = vadd.f32 %v839, %v836
    %v841 = vadd.f32 %v840, %v837
    %v842 = vrot.slane %v841, 4
    %v843 = vadd.f32 %v841, %v842
    %v844 = vrot.slane %v843, 2
    %v845 = vadd.f32 %v843, %v844
    %v846 = vrot.slane %v845, 1
    %v847 = vadd.f32 %v845, %v846
    %849 = vset.pattern.permute.xlu0 34
    %850 = vperm.xlu0 %849, %v32
    %v851 = vpop.permute.xlu0 %850
    %v853 = vadd.f32 %v847, %v851
    %854 = vst [vmem:[%s2] sm:$0x1] %v853
    // Predicated region
    $region14: #{mlp_forward.1} parent=1 // pred_check
      _
    $region15: #{mlp_forward.1} parent=1 // pred_check_branch
      %856 = sbr.rel (0) target = $region17
    $region16: #{mlp_forward.1} parent=1 // pred_region
      _
    $region17: #{mlp_forward.1} parent=1 // pred_fallthru
      _
    // Predicated region
    $region18: #{mlp_forward.1} parent=1 // pred_check
      _
    $region19: #{mlp_forward.1} parent=1 // pred_check_branch
      %858 = sbr.rel (0) target = $region21
    $region20: #{mlp_forward.1} parent=1 // pred_region
      _
    $region21: #{mlp_forward.1} parent=1 // pred_fallthru
      _
    %859 = vsyncpa [#allocation3], 1

</llo_original>
